<compile_context>
chip_gen: v7x
topology: tpu7x:2x2x1
jax: 0.10.0
libtpu: 0.0.40
codegen_flags: <defaults>
</compile_context>

<pallas_src>
import jax
import jax.numpy as jnp
import numpy as np
from jax.experimental import pallas as pl
from jax.experimental.pallas import tpu as pltpu

BN_EPS = 1e-5
_LANE = 128
_VMEM_LIMIT_BYTES = 32 * 1024 * 1024   # >= scoped defaults, < v7x physical 64 MiB
_VMEM_TILE_BUDGET = 24 * 1024 * 1024   # headroom under the limit for the tiler


# ----------------------------------------------------------------------------
# Pallas kernel: one (batch element, spatial tile) per grid step.
# ----------------------------------------------------------------------------
def residual_block_kernel(x_ref, w_ref, b_ref, o_ref):
    # x_ref : (1, C, T)  bf16 activation tile (T = tile of padded H*W, T%128==0)
    # w_ref : (3, C, C)  bf16 1x1-conv weights with BN scale pre-folded
    # b_ref : (3, C, 1)  f32 folded bias (conv bias + BN shift)
    # o_ref : (1, C, T)  bf16 output tile (lane-dense, unmasked stores)
    x = x_ref[0]                                            # (C, T) bf16

    # conv1 + bn1 + relu  (f32 accumulation on the MXU)
    h = jnp.dot(w_ref[0], x, preferred_element_type=jnp.float32)
    h = jnp.maximum(h + b_ref[0], 0.0)

    # conv2 + bn2 + relu
    h = jnp.dot(w_ref[1], h.astype(jnp.bfloat16),
                preferred_element_type=jnp.float32)
    h = jnp.maximum(h + b_ref[1], 0.0)

    # conv3 + bn3
    h = jnp.dot(w_ref[2], h.astype(jnp.bfloat16),
                preferred_element_type=jnp.float32)
    h = h + b_ref[2]

    # identity shortcut (residual add in f32), final ReLU
    o_ref[0] = jnp.maximum(h + x.astype(jnp.float32), 0.0).astype(o_ref.dtype)


# ----------------------------------------------------------------------------
# Tile selection: largest lane-dense spatial tile fitting the VMEM budget.
# ----------------------------------------------------------------------------
def _pick_spatial_tile(hw, c, n):
    # Per grid step: double-buffered bf16 in + out tiles (2 bufs * 2 tensors *
    # 2*C*T bytes = 8*C*T) plus single-buffered weights/biases.
    const_bytes = 3 * c * c * 2 + 3 * c * 4
    act_budget = max(_VMEM_TILE_BUDGET - const_bytes, 1 << 20)
    t = (act_budget // (8 * c)) // _LANE * _LANE
    t = max(t, _LANE)

    hw_pad_min = pl.cdiv(hw, _LANE) * _LANE                 # lane-dense floor
    t = min(t, hw_pad_min)

    # v7x megacore: ensure >= 2 grid steps when possible (free ~2x for N=1).
    if n * pl.cdiv(hw_pad_min, t) < 2 and hw_pad_min >= 2 * _LANE:
        t = max(_LANE, (hw_pad_min // 2) // _LANE * _LANE)
    return t


def _const_spec(shape):
    """BlockSpec for a grid-invariant input; single-buffered when supported."""
    idx = lambda n, s: (0,) * len(shape)
    try:
        return pl.BlockSpec(shape, idx, pipeline_mode=pl.Buffered(1))
    except TypeError:   # older jax without pipeline_mode / Buffered
        return pl.BlockSpec(shape, idx)


# ----------------------------------------------------------------------------
# Wrapper: NCHW in / NCHW out (PyTorch convention), no HBM transposes.
# ----------------------------------------------------------------------------
def residual_block_pallas(x_nchw, kparams):
    w_pack, b_pack = kparams                     # (3, Cout, Cin), (3, Cout, 1)
    N, Cin, H, W = x_nchw.shape
    Cout = w_pack.shape[1]
    if Cin != Cout:
        # TODO(synk): the PyTorch `downsample` shortcut (strided conv + BN) is
        # not implemented; only the identity shortcut path is supported.
        raise ValueError("identity shortcut requires in_channels == out_channels")

    HW = H * W
    T = _pick_spatial_tile(HW, Cout, N)
    HW_pad = pl.cdiv(HW, T) * T

    x_flat = x_nchw.astype(jnp.bfloat16).reshape(N, Cin, HW)   # free reshape
    if HW_pad != HW:
        x_flat = jnp.pad(x_flat, ((0, 0), (0, 0), (0, HW_pad - HW)))

    cost = pl.CostEstimate(
        flops=2 * 3 * Cout * Cout * HW_pad * N,
        transcendentals=0,
        bytes_accessed=2 * N * Cin * HW_pad * 2 + w_pack.size * 2 + b_pack.size * 4,
    )

    out_flat = pl.pallas_call(
        residual_block_kernel,
        out_shape=jax.ShapeDtypeStruct((N, Cout, HW_pad), jnp.bfloat16),
        grid_spec=pltpu.PrefetchScalarGridSpec(
            num_scalar_prefetch=0,
            grid=(N, HW_pad // T),
            in_specs=[
                pl.BlockSpec((1, Cin, T), lambda n, s: (n, 0, s)),
                _const_spec((3, Cout, Cin)),
                _const_spec((3, Cout, 1)),
            ],
            out_specs=pl.BlockSpec((1, Cout, T), lambda n, s: (n, 0, s)),
        ),
        compiler_params=pltpu.CompilerParams(
            dimension_semantics=("parallel", "parallel"),
            vmem_limit_bytes=_VMEM_LIMIT_BYTES),
        cost_estimate=cost,
    )(x_flat, w_pack, b_pack)

    out_flat = out_flat[:, :, :HW]               # drop spatial padding
    return out_flat.reshape(N, Cout, H, W)       # free reshape back to NCHW


# ----------------------------------------------------------------------------
# Deterministic parameter init (PyTorch-layout tensors, BN eval-mode stats).
# ----------------------------------------------------------------------------
def init_torch_params(key, in_channels, out_channels):
    ks = jax.random.split(key, 18)

    def conv(kw, kb, ci, co):
        return (0.05 * jax.random.normal(kw, (co, ci, 1, 1), jnp.float32),
                0.05 * jax.random.normal(kb, (co,), jnp.float32))

    def bn(kg, kbt, km, kv, c):
        return (jax.random.uniform(kg, (c,), jnp.float32, 0.5, 1.5),
                0.1 * jax.random.normal(kbt, (c,), jnp.float32),
                0.1 * jax.random.normal(km, (c,), jnp.float32),
                jax.random.uniform(kv, (c,), jnp.float32, 0.5, 1.5))

    p = {}
    p["w1"], p["b1"] = conv(ks[0], ks[1], in_channels, out_channels)
    p["g1"], p["be1"], p["m1"], p["v1"] = bn(ks[2], ks[3], ks[4], ks[5], out_channels)
    p["w2"], p["b2"] = conv(ks[6], ks[7], out_channels, out_channels)
    p["g2"], p["be2"], p["m2"], p["v2"] = bn(ks[8], ks[9], ks[10], ks[11], out_channels)
    p["w3"], p["b3"] = conv(ks[12], ks[13], out_channels, out_channels)
    p["g3"], p["be3"], p["m3"], p["v3"] = bn(ks[14], ks[15], ks[16], ks[17], out_channels)
    return p


def to_kernel_params(p):
    """Fold BN (eval mode) + conv bias into weight/bias; pack into 2 arrays."""
    def fold(w, b, gamma, beta, mean, var):
        scale = gamma / jnp.sqrt(var + BN_EPS)              # (Cout,)
        w_f = w[:, :, 0, 0] * scale[:, None]                # fold in f32
        b_f = (b - mean) * scale + beta
        return w_f, b_f

    w1, b1 = fold(p["w1"], p["b1"], p["g1"], p["be1"], p["m1"], p["v1"])
    w2, b2 = fold(p["w2"], p["b2"], p["g2"], p["be2"], p["m2"], p["v2"])
    w3, b3 = fold(p["w3"], p["b3"], p["g3"], p["be3"], p["m3"], p["v3"])
    w_pack = jnp.stack([w1, w2, w3]).astype(jnp.bfloat16)            # (3, C, C)
    b_pack = jnp.stack([b1, b2, b3]).astype(jnp.float32)[..., None]  # (3, C, 1)
    return w_pack, b_pack


# ----------------------------------------------------------------------------
# Pure-JAX reference (mirrors the PyTorch forward, BN in eval mode).
# ----------------------------------------------------------------------------
def residual_block_reference(x, p):
    def layer(h, w, b, gamma, beta, mean, var):
        y = jnp.einsum("oi,nihw->nohw", w[:, :, 0, 0], h,
                       preferred_element_type=jnp.float32)
        y = y + b[None, :, None, None]
        y = (y - mean[None, :, None, None]) / jnp.sqrt(
            var + BN_EPS)[None, :, None, None]
        return y * gamma[None, :, None, None] + beta[None, :, None, None]

    h = jnp.maximum(layer(x, p["w1"], p["b1"], p["g1"], p["be1"],
                          p["m1"], p["v1"]), 0.0)
    h = jnp.maximum(layer(h, p["w2"], p["b2"], p["g2"], p["be2"],
                          p["m2"], p["v2"]), 0.0)
    h = layer(h, p["w3"], p["b3"], p["g3"], p["be3"], p["m3"], p["v3"])
    return jnp.maximum(h + x, 0.0)


# ----------------------------------------------------------------------------
if __name__ == "__main__":
    key = jax.random.PRNGKey(0)
    k_x, k_p = jax.random.split(key)

    # in_channels == out_channels (downsample=None path of ResidualBlock)
    N, C, H, W = 2, 32, 16, 16
    x = jax.random.normal(k_x, (N, C, H, W), jnp.float32)

    torch_params = init_torch_params(k_p, C, C)
    kernel_params = to_kernel_params(torch_params)

    out = jax.jit(residual_block_pallas)(x, kernel_params)
    out = jax.block_until_ready(out)

    ref = jax.block_until_ready(residual_block_reference(x, torch_params))

    assert out.shape == (N, C, H, W), out.shape
    out_f32 = np.asarray(out.astype(jnp.float32))
    max_err = float(np.max(np.abs(out_f32 - np.asarray(ref))))
    assert np.allclose(out_f32, np.asarray(ref),
                       rtol=5e-2, atol=5e-2), f"max_err={max_err}"

    print("KERNEL_OK")
</pallas_src>

<mosaic_0001>
module attributes {stable_mosaic.version = 11 : i64} {
  func.func @residual_block_kernel(%arg0: i32, %arg1: i32, %arg2: memref<1x32x256xbf16, #tpu.memory_space<vmem>>, %arg3: memref<3x32x32xbf16, #tpu.memory_space<vmem>>, %arg4: memref<3x32x1xf32, #tpu.memory_space<vmem>>, %arg5: memref<1x32x256xbf16, #tpu.memory_space<vmem>>) attributes {dimension_semantics = [#tpu.dimension_semantics<parallel>, #tpu.dimension_semantics<parallel>], iteration_bounds = array<i64: 2, 1>, scalar_prefetch = 0 : i64, scratch_operands = 0 : i64, tpu.core_type = #tpu.core_type<tc>, window_params = [{transform_indices = @transform_0, window_bounds = array<i64: 1, 32, 256>}, {pipeline_mode = #tpu.pipeline_mode<synchronous>, transform_indices = @transform_1, window_bounds = array<i64: 3, 32, 32>}, {pipeline_mode = #tpu.pipeline_mode<synchronous>, transform_indices = @transform_2, window_bounds = array<i64: 3, 32, 1>}, {transform_indices = @transform_3, window_bounds = array<i64: 1, 32, 256>}]} {
    %c0 = arith.constant 0 : index
    %c0_0 = arith.constant 0 : index
    %c0_1 = arith.constant 0 : index
    %0 = vector.load %arg2[%c0, %c0_0, %c0_1] : memref<1x32x256xbf16, #tpu.memory_space<vmem>>, vector<1x32x256xbf16>
    %1 = vector.shape_cast %0 : vector<1x32x256xbf16> to vector<32x256xbf16>
    %c0_2 = arith.constant 0 : index
    %c0_3 = arith.constant 0 : index
    %c0_4 = arith.constant 0 : index
    %2 = vector.load %arg3[%c0_2, %c0_3, %c0_4] : memref<3x32x32xbf16, #tpu.memory_space<vmem>>, vector<1x32x32xbf16>
    %3 = vector.shape_cast %2 : vector<1x32x32xbf16> to vector<32x32xbf16>
    %cst = arith.constant dense<0.000000e+00> : vector<32x256xf32>
    %4 = tpu.matmul %3, %1, %cst {dimension_numbers = #tpu.dot_dimension_numbers<[1], [0], [0], [1], [0, 0, 1, 1], [], []>} : vector<32x32xbf16>, vector<32x256xbf16>, vector<32x256xf32> -> vector<32x256xf32>
    %c0_5 = arith.constant 0 : index
    %c0_6 = arith.constant 0 : index
    %c0_7 = arith.constant 0 : index
    %5 = vector.load %arg4[%c0_5, %c0_6, %c0_7] : memref<3x32x1xf32, #tpu.memory_space<vmem>>, vector<1x32x1xf32>
    %6 = vector.shape_cast %5 : vector<1x32x1xf32> to vector<32x1xf32>
    %7 = vector.broadcast %6 : vector<32x1xf32> to vector<32x256xf32>
    %8 = arith.addf %4, %7 : vector<32x256xf32>
    %cst_8 = arith.constant 0.000000e+00 : f32
    %9 = vector.broadcast %cst_8 : f32 to vector<32x256xf32>
    %10 = arith.maximumf %8, %9 : vector<32x256xf32>
    %c1 = arith.constant 1 : index
    %c0_9 = arith.constant 0 : index
    %c0_10 = arith.constant 0 : index
    %11 = vector.load %arg3[%c1, %c0_9, %c0_10] : memref<3x32x32xbf16, #tpu.memory_space<vmem>>, vector<1x32x32xbf16>
    %12 = vector.shape_cast %11 : vector<1x32x32xbf16> to vector<32x32xbf16>
    %13 = arith.truncf %10 : vector<32x256xf32> to vector<32x256xbf16>
    %cst_11 = arith.constant dense<0.000000e+00> : vector<32x256xf32>
    %14 = tpu.matmul %12, %13, %cst_11 {dimension_numbers = #tpu.dot_dimension_numbers<[1], [0], [0], [1], [0, 0, 1, 1], [], []>} : vector<32x32xbf16>, vector<32x256xbf16>, vector<32x256xf32> -> vector<32x256xf32>
    %c1_12 = arith.constant 1 : index
    %c0_13 = arith.constant 0 : index
    %c0_14 = arith.constant 0 : index
    %15 = vector.load %arg4[%c1_12, %c0_13, %c0_14] : memref<3x32x1xf32, #tpu.memory_space<vmem>>, vector<1x32x1xf32>
    %16 = vector.shape_cast %15 : vector<1x32x1xf32> to vector<32x1xf32>
    %17 = vector.broadcast %16 : vector<32x1xf32> to vector<32x256xf32>
    %18 = arith.addf %14, %17 : vector<32x256xf32>
    %cst_15 = arith.constant 0.000000e+00 : f32
    %19 = vector.broadcast %cst_15 : f32 to vector<32x256xf32>
    %20 = arith.maximumf %18, %19 : vector<32x256xf32>
    %c2 = arith.constant 2 : index
    %c0_16 = arith.constant 0 : index
    %c0_17 = arith.constant 0 : index
    %21 = vector.load %arg3[%c2, %c0_16, %c0_17] : memref<3x32x32xbf16, #tpu.memory_space<vmem>>, vector<1x32x32xbf16>
    %22 = vector.shape_cast %21 : vector<1x32x32xbf16> to vector<32x32xbf16>
    %23 = arith.truncf %20 : vector<32x256xf32> to vector<32x256xbf16>
    %cst_18 = arith.constant dense<0.000000e+00> : vector<32x256xf32>
    %24 = tpu.matmul %22, %23, %cst_18 {dimension_numbers = #tpu.dot_dimension_numbers<[1], [0], [0], [1], [0, 0, 1, 1], [], []>} : vector<32x32xbf16>, vector<32x256xbf16>, vector<32x256xf32> -> vector<32x256xf32>
    %c2_19 = arith.constant 2 : index
    %c0_20 = arith.constant 0 : index
    %c0_21 = arith.constant 0 : index
    %25 = vector.load %arg4[%c2_19, %c0_20, %c0_21] : memref<3x32x1xf32, #tpu.memory_space<vmem>>, vector<1x32x1xf32>
    %26 = vector.shape_cast %25 : vector<1x32x1xf32> to vector<32x1xf32>
    %27 = vector.broadcast %26 : vector<32x1xf32> to vector<32x256xf32>
    %28 = arith.addf %24, %27 : vector<32x256xf32>
    %29 = arith.extf %1 : vector<32x256xbf16> to vector<32x256xf32>
    %30 = arith.addf %28, %29 : vector<32x256xf32>
    %cst_22 = arith.constant 0.000000e+00 : f32
    %31 = vector.broadcast %cst_22 : f32 to vector<32x256xf32>
    %32 = arith.maximumf %30, %31 : vector<32x256xf32>
    %33 = arith.truncf %32 : vector<32x256xf32> to vector<32x256xbf16>
    %c0_23 = arith.constant 0 : index
    %c0_24 = arith.constant 0 : index
    %c0_25 = arith.constant 0 : index
    %34 = vector.load %arg5[%c0_23, %c0_24, %c0_25] : memref<1x32x256xbf16, #tpu.memory_space<vmem>>, vector<1x32x256xbf16>
    %35 = vector.shape_cast %34 : vector<1x32x256xbf16> to vector<32x256xbf16>
    %36 = vector.shape_cast %33 : vector<32x256xbf16> to vector<1x32x256xbf16>
    tpu.vector_store %arg5[%c0_23, %c0_24, %c0_25], %36 {strides = array<i32>} : memref<1x32x256xbf16, #tpu.memory_space<vmem>>, vector<1x32x256xbf16>,
    return
  }
  func.func @transform_0(%arg0: i32, %arg1: i32) -> (i32, i32, i32) {
    %c0_i32 = arith.constant 0 : i32
    %c0_i32_0 = arith.constant 0 : i32
    return %arg0, %c0_i32, %arg1 : i32, i32, i32
  }
  func.func @transform_1(%arg0: i32, %arg1: i32) -> (i32, i32, i32) {
    %c0_i32 = arith.constant 0 : i32
    %c0_i32_0 = arith.constant 0 : i32
    %c0_i32_1 = arith.constant 0 : i32
    %c0_i32_2 = arith.constant 0 : i32
    return %c0_i32, %c0_i32_0, %c0_i32_1 : i32, i32, i32
  }
  func.func @transform_2(%arg0: i32, %arg1: i32) -> (i32, i32, i32) {
    %c0_i32 = arith.constant 0 : i32
    %c0_i32_0 = arith.constant 0 : i32
    %c0_i32_1 = arith.constant 0 : i32
    %c0_i32_2 = arith.constant 0 : i32
    return %c0_i32, %c0_i32_0, %c0_i32_1 : i32, i32, i32
  }
  func.func @transform_3(%arg0: i32, %arg1: i32) -> (i32, i32, i32) {
    %c0_i32 = arith.constant 0 : i32
    %c0_i32_0 = arith.constant 0 : i32
    return %arg0, %c0_i32, %arg1 : i32, i32, i32
  }
}

</mosaic_0001>

<llo_original>
// kernel: residual_block_pallas.1
$region0: #{residual_block_pallas.1}
  #allocation0 [shape = 'u32[]', space=smem, size = 0x4, offset = 0x4, fixed_abs, tag = 'smem constant byte address 0x4 - core index']
  #allocation1 [shape = 'u32[144,128]{1,0:T(1,128)}', space=vmem, size = 0x12000, scoped, tag = 'internal scratch']
  %s0 = inlined_call_operand.vmem [shape: bf16[2,32,256], index: 0, kind: input, shape index: {}]
  %s1 = inlined_call_operand.vmem [shape: bf16[3,32,32], index: 1, kind: input, shape index: {}]
  %s2 = inlined_call_operand.vmem [shape: f32[3,32,1], index: 2, kind: input, shape index: {}]
  %s3 = inlined_call_operand.vmem [shape: bf16[2,32,256], index: 3, kind: output, shape index: {}]
  %s4 = sld [smem:[#allocation0]]
  $region45: #{residual_block_pallas.1} parent=0
    _
  %s6 = ssub.s32 1, %s4
  %s7 = scalar_select 0, %s6, %s4
  loop: start=0, step=1, limit=4
  $region2: #{residual_block_pallas.1} parent=0 // loop_pre_header
    _
  $region3: #{residual_block_pallas.1} parent=0 // loop_header
    %s9 = sphi 0, %s13
    %p10 = scmp.ge.s32.totalorder %s9, 4
    %s16 = sphi 0, %s28
    %s17 = sphi 0, %s24
    %s18 = sphi 0, %s16
    %s19 = sphi 0, %s17
    %s20 = sphi 0, %s18
    %s21 = sphi 0, %s19
    %s33 = sphi 0, %s35
    %s36 = sphi 0, %s33
    %s37 = sphi 0, %s36
    %s53 = sphi 0, %s37
    %s57 = sphi 0, %s57
    %s59 = sphi 0, %s57
    %s60 = sphi 0, %s59
    %s74 = sphi 0, %s60
    %s78 = sphi 0, %s78
    %s80 = sphi 0, %s78
    %s81 = sphi 0, %s80
    %s95 = sphi 0, %s81
    %s103 = sphi 0, %s105
    %s106 = sphi 0, %s103
    %s107 = sphi 0, %s106
    %s123 = sphi 0, %s107
  $region4: #{residual_block_pallas.1} parent=0 // loop_header_branch
    %12 = sbr.rel (%p10) target = $region8
  $region5: #{residual_block_pallas.1} parent=0 // loop_body
    %s14 = ssub.s32 %s9, 1
    %s15 = ssub.s32 %s9, 2
    %s22 = sadd.s32 1, %s17
    %p23 = scmp.ge.s32.totalorder %s22, 1
    %s24 = scalar_select %p23, 0, %s22
    %s25 = sadd.s32 1, %s16
    %s26 = scalar_select %p23, %s25, %s16
    %p27 = scmp.ge.s32.totalorder %s26, 2
    %s28 = scalar_select %p27, 0, %s26
    %s29 = ssub.s32 %s16, %s28
    %s30 = ssub.s32 %s17, %s24
    %s31 = sor.u32 %s29, %s30
    %p32 = scmp.eq.s32.totalorder %s31, 0
    %s34 = sadd.s32 %s33, 1
    %s35 = scalar_select %p32, %s33, %s34
    %p38 = pneg %p32
    %p39 = scmp.eq.s32.totalorder %s9, 1
    %p40 = por %p38, %p39
    %p41 = scmp.ne.s32.totalorder %s33, %s36
    %p42 = scmp.eq.s32.totalorder %s9, 0
    %p43 = por %p41, %p42
    %p44 = scmp.ne.s32.totalorder %s33, %s36
    %p45 = scmp.eq.s32.totalorder %s14, 1
    %p46 = por %p44, %p45
    %p47 = scmp.ne.s32.totalorder %s36, %s37
    %p48 = scmp.eq.s32.totalorder %s14, 0
    %p49 = por %p47, %p48
    %p50 = scmp.ne.s32.totalorder %s36, %s37
    %p51 = scmp.eq.s32.totalorder %s15, 1
    %p52 = por %p50, %p51
    %p54 = scmp.ne.s32.totalorder %s37, %s53
    %p55 = scmp.eq.s32.totalorder %s15, 0
    %p56 = por %p54, %p55
    %s58 = sadd.s32 %s57, 1
    %p61 = scmp.eq.s32.totalorder %s9, 1
    %p62 = scmp.ne.s32.totalorder %s57, %s59
    %p63 = scmp.eq.s32.totalorder %s9, 0
    %p64 = por %p62, %p63
    %p65 = scmp.ne.s32.totalorder %s57, %s59
    %p66 = scmp.eq.s32.totalorder %s14, 1
    %p67 = por %p65, %p66
    %p68 = scmp.ne.s32.totalorder %s59, %s60
    %p69 = scmp.eq.s32.totalorder %s14, 0
    %p70 = por %p68, %p69
    %p71 = scmp.ne.s32.totalorder %s59, %s60
    %p72 = scmp.eq.s32.totalorder %s15, 1
    %p73 = por %p71, %p72
    %p75 = scmp.ne.s32.totalorder %s60, %s74
    %p76 = scmp.eq.s32.totalorder %s15, 0
    %p77 = por %p75, %p76
    %s79 = sadd.s32 %s78, 1
    %p82 = scmp.eq.s32.totalorder %s9, 1
    %p83 = scmp.ne.s32.totalorder %s78, %s80
    %p84 = scmp.eq.s32.totalorder %s9, 0
    %p85 = por %p83, %p84
    %p86 = scmp.ne.s32.totalorder %s78, %s80
    %p87 = scmp.eq.s32.totalorder %s14, 1
    %p88 = por %p86, %p87
    %p89 = scmp.ne.s32.totalorder %s80, %s81
    %p90 = scmp.eq.s32.totalorder %s14, 0
    %p91 = por %p89, %p90
    %p92 = scmp.ne.s32.totalorder %s80, %s81
    %p93 = scmp.eq.s32.totalorder %s15, 1
    %p94 = por %p92, %p93
    %p96 = scmp.ne.s32.totalorder %s81, %s95
    %p97 = scmp.eq.s32.totalorder %s15, 0
    %p98 = por %p96, %p97
    %s99 = ssub.s32 %s16, %s28
    %s100 = ssub.s32 %s17, %s24
    %s101 = sor.u32 %s99, %s100
    %p102 = scmp.eq.s32.totalorder %s101, 0
    %s104 = sadd.s32 %s103, 1
    %s105 = scalar_select %p102, %s103, %s104
    %p108 = pneg %p102
    %p109 = scmp.eq.s32.totalorder %s9, 1
    %p110 = por %p108, %p109
    %p111 = scmp.ne.s32.totalorder %s103, %s106
    %p112 = scmp.eq.s32.totalorder %s9, 0
    %p113 = por %p111, %p112
    %p114 = scmp.ne.s32.totalorder %s103, %s106
    %p115 = scmp.eq.s32.totalorder %s14, 1
    %p116 = por %p114, %p115
    %p117 = scmp.ne.s32.totalorder %s106, %s107
    %p118 = scmp.eq.s32.totalorder %s14, 0
    %p119 = por %p117, %p118
    %p120 = scmp.ne.s32.totalorder %s106, %s107
    %p121 = scmp.eq.s32.totalorder %s15, 1
    %p122 = por %p120, %p121
    %p124 = scmp.ne.s32.totalorder %s107, %s123
    %p125 = scmp.eq.s32.totalorder %s15, 0
    %p126 = por %p124, %p125
    %p127 = scmp.le.s32.totalorder 1, %s9
    %p128 = scmp.lt.s32.totalorder %s9, 3
    %p129 = pnand %p127, %p128
    %p130 = pneg %p129
    // Predicated region
    $region9: #{residual_block_pallas.1} parent=5 // pred_check
      _
    $region10: #{residual_block_pallas.1} parent=5 // pred_check_branch
      %132 = sbr.rel (%p129) target = $region12
    $region11: #{residual_block_pallas.1} parent=5 // pred_region
      %s133 = ssub.s32 %s9, 1
      // Predicated region
      $region13: #{residual_block_pallas.1} parent=11 // pred_check
        %p134 = pneg %p70
      $region14: #{residual_block_pallas.1} parent=11 // pred_check_branch
        %136 = sbr.rel (%p134) target = $region16
      $region15: #{residual_block_pallas.1} parent=11 // pred_region
        _
      $region16: #{residual_block_pallas.1} parent=11 // pred_fallthru
        _
      // Predicated region
      $region17: #{residual_block_pallas.1} parent=11 // pred_check
        %p137 = pneg %p91
      $region18: #{residual_block_pallas.1} parent=11 // pred_check_branch
        %139 = sbr.rel (%p137) target = $region20
      $region19: #{residual_block_pallas.1} parent=11 // pred_region
        _
      $region20: #{residual_block_pallas.1} parent=11 // pred_fallthru
        _
    $region12: #{residual_block_pallas.1} parent=5 // pred_fallthru
      _
    %p140 = scmp.lt.s32.totalorder %s9, 2
    // Predicated region
    $region21: #{residual_block_pallas.1} parent=5 // pred_check
      %p141 = pneg %p140
    $region22: #{residual_block_pallas.1} parent=5 // pred_check_branch
      %143 = sbr.rel (%p141) target = $region24
    $region23: #{residual_block_pallas.1} parent=5 // pred_region
      // Predicated region
      $region25: #{residual_block_pallas.1} parent=23 // pred_check
        %p144 = pneg %p43
      $region26: #{residual_block_pallas.1} parent=23 // pred_check_branch
        %146 = sbr.rel (%p144) target = $region28
      $region27: #{residual_block_pallas.1} parent=23 // pred_region
        %s147 = smul.u32 2, %s17
        %p148 = scmp.lt.s32.totalorder %s16, 1
        %s149 = scalar_select %p148, %s16, 1
        %p150 = scmp.lt.s32.totalorder %s147, 1
        %s151 = scalar_select %p150, %s147, 1
        %s152 = smul.addr %s149, 8
        %s153 = sadd.s32 %s151, %s152
        %s154 = smul.addr %s153, 4
        %s155 = scalar_lea.vmem %s0, %s154
        %s156 = smul.u32 2, %s17
      $region28: #{residual_block_pallas.1} parent=23 // pred_fallthru
        _
    $region24: #{residual_block_pallas.1} parent=5 // pred_fallthru
      _
    %p157 = scmp.le.s32.totalorder 1, %s9
    %p158 = scmp.lt.s32.totalorder %s9, 3
    %p159 = pnand %p157, %p158
    %p160 = pneg %p159
    // Predicated region
    $region29: #{residual_block_pallas.1} parent=5 // pred_check
      _
    $region30: #{residual_block_pallas.1} parent=5 // pred_check_branch
      %162 = sbr.rel (%p159) target = $region32
    $region31: #{residual_block_pallas.1} parent=5 // pred_region
      %s163 = ssub.s32 %s9, 1
      %s164 = smul.u32 2, %s19
      %p165 = scmp.lt.s32.totalorder %s18, 1
      %s166 = scalar_select %p165, %s18, 1
      %p167 = scmp.lt.s32.totalorder %s164, 1
      %s168 = scalar_select %p167, %s164, 1
      %s169 = smul.addr %s166, 8
      %s170 = sadd.s32 %s168, %s169
      %s171 = smul.addr %s170, 4
      %s172 = scalar_lea.vmem %s0, %s171
      %p173 = pneg %p49
      %p174 = pneg %p46
      %p175 = pneg %p70
      %p176 = pneg %p67
      %p177 = pneg %p91
      %p178 = pneg %p88
      %p179 = pneg %p119
      %p180 = pneg %p116
      %s181 = smul.u32 2, %s19
      %p182 = scmp.lt.s32.totalorder %s18, 1
      %s183 = scalar_select %p182, %s18, 1
      %p184 = scmp.lt.s32.totalorder %s181, 1
      %s185 = scalar_select %p184, %s181, 1
      %s186 = smul.addr %s183, 8
      %s187 = sadd.s32 %s185, %s186
      %s188 = smul.addr %s187, 4
      %s189 = scalar_lea.vmem %s3, %s188
      %s190 = smul.u32 2, %s19
      %p191 = scmp.lt.s32.totalorder %s18, 1
      %s192 = scalar_select %p191, %s18, 1
      %p193 = scmp.lt.s32.totalorder %s190, 1
      %s194 = scalar_select %p193, %s190, 1
      %s195 = smul.addr %s192, 8
      %s196 = sadd.s32 %s194, %s195
      %s197 = smul.addr %s196, 4
      %s198 = scalar_lea.vmem %s0, %s197
      %s199 = smul.u32 2, %s19
      %s200 = smul.u32 2, %s19
      %p201 = scmp.lt.s32.totalorder %s18, 1
      %s202 = scalar_select %p201, %s18, 1
      %p203 = scmp.lt.s32.totalorder %s200, 1
      %s204 = scalar_select %p203, %s200, 1
      %s205 = smul.addr %s202, 8
      %s206 = sadd.s32 %s204, %s205
      %s207 = smul.addr %s206, 4
      %s208 = scalar_lea.vmem %s3, %s207
      %s209 = smul.u32 2, %s19
      %v211 = vld [vmem:[%s198] sm:$0xff]
      %v212 = vld [vmem:[%s198 + $0x8] sm:$0xff]
      %v213 = vld [vmem:[%s198 + $0x10] sm:$0xff]
      %v214 = vld [vmem:[%s198 + $0x18] sm:$0xff]
      %v215 = vld [vmem:[%s1] sm:$0xf]
      %v216 = vld [vmem:[%s1 + $0x4] sm:$0xf]
      %v217 = vld [vmem:[%s1 + $0x8] sm:$0xf]
      %v218 = vld [vmem:[%s1 + $0xc] sm:$0xf]
      %v219 = vld [vmem:[%s2] sm:$0xff]
      %v220 = vld [vmem:[%s2 + $0x8] sm:$0xff]
      %v221 = vld [vmem:[%s2 + $0x10] sm:$0xff]
      %v222 = vld [vmem:[%s2 + $0x18] sm:$0xff]
      %224 = vset.pattern.permute.xlu0 0
      %225 = vperm.xlu0 %224, %v219
      %v226 = vpop.permute.xlu0 %225
      %229 = vset.pattern.permute.xlu0 0
      %230 = vperm.xlu0 %229, %v220
      %v231 = vpop.permute.xlu0 %230
      %234 = vset.pattern.permute.xlu0 0
      %235 = vperm.xlu0 %234, %v221
      %v236 = vpop.permute.xlu0 %235
      %239 = vset.pattern.permute.xlu0 0
      %240 = vperm.xlu0 %239, %v222
      %v241 = vpop.permute.xlu0 %240
      %v247 = vunpack.c.l.b16 %v215
      %v248 = vunpack.c.l.b16 %v216
      %v249 = vunpack.c.l.b16 %v217
      %v250 = vunpack.c.l.b16 %v218
      %v251 = vpack.c.b16 %v248, %v247
      %v252 = vpack.c.b16 %v250, %v249
      %v257 = vunpack.c.l.b16 %v211
      %v258 = vunpack.c.h.b16 %v211
      %v259 = vunpack.c.l.b16 %v212
      %v260 = vunpack.c.h.b16 %v212
      %v261 = vunpack.c.l.b16 %v213
      %v262 = vunpack.c.h.b16 %v213
      %v263 = vunpack.c.l.b16 %v214
      %v264 = vunpack.c.h.b16 %v214
      %v265 = vpack.c.b16 %v259, %v257
      %v266 = vpack.c.b16 %v260, %v258
      %v267 = vpack.c.b16 %v263, %v261
      %v268 = vpack.c.b16 %v264, %v262
      %vm273 = vcmask 261120
      %v275 = vsel %vm273, %v251, 0
      %v278 = vsel %vm273, %v252, 0
      %280 = vmatprep.subr.bf16.mxu0 %v266
      %281 = vmatpush1.bf16.msra.mxu0 %v265
      %282 = vmatprep.subr.bf16.mxu0 %v268
      %283 = vmatpush1.bf16.msra.mxu0 %v267
      %284 = vmatprep.subr.bf16.mxu0 0
      %285 = vmatpush1.bf16.msra.mxu0 0
      %286 = vmatprep.subr.bf16.mxu0 0
      %287 = vmatpush1.bf16.msra.mxu0 0
      %288 = vmatprep.subr.bf16.mxu0 0
      %289 = vmatpush1.bf16.msra.mxu0 0
      %290 = vmatprep.subr.bf16.mxu0 0
      %291 = vmatpush1.bf16.msra.mxu0 0
      %292 = vmatprep.subr.bf16.mxu0 0
      %293 = vmatpush1.bf16.msra.mxu0 0
      %294 = vmatprep.subr.bf16.mxu0 0
      %295 = vmatpush1.bf16.msra.mxu0 0
      %296 = vmatprep.subr.bf16.mxu0 0
      %297 = vmatpush1.bf16.msra.mxu0 0
      %298 = vmatprep.subr.bf16.mxu0 0
      %299 = vmatpush1.bf16.msra.mxu0 0
      %300 = vmatprep.subr.bf16.mxu0 0
      %301 = vmatpush1.bf16.msra.mxu0 0
      %302 = vmatprep.subr.bf16.mxu0 0
      %303 = vmatpush1.bf16.msra.mxu0 0
      %304 = vmatprep.subr.bf16.mxu0 0
      %305 = vmatpush1.bf16.msra.mxu0 0
      %306 = vmatprep.subr.bf16.mxu0 0
      %307 = vmatpush1.bf16.msra.mxu0 0
      %308 = vmatprep.subr.bf16.mxu0 0
      %309 = vmatpush1.bf16.msra.mxu0 0
      %310 = vmatprep.subr.bf16.mxu0 0
      %311 = vmatpush1.bf16.msra.mxu0 0
      %312 = vmatprep.mubr.bf16.mxu0 0
      %313 = vmatmul.mubr.bf16.gmra.mrb[0].mxu0 %v275
      %v314 = vpop.f32.mrb[0].mxu0
      %v315 = vadd.f32 %v226, %v314
      %v316 = vpop.f32.mrb[0].mxu0
      %v317 = vadd.f32 %v226, %v316
      %v318 = vpop.f32.mrb[0].mxu0
      %v319 = vadd.f32 %v231, %v318
      %v320 = vpop.f32.mrb[0].mxu0
      %v321 = vadd.f32 %v231, %v320
      %322 = vmatprep.mubr.bf16.mxu0 0
      %323 = vmatmul.mubr.bf16.gmra.mrb[0].mxu0 %v278
      %v324 = vpop.f32.mrb[0].mxu0
      %v325 = vadd.f32 %v236, %v324
      %v326 = vpop.f32.mrb[0].mxu0
      %v327 = vadd.f32 %v236, %v326
      %v328 = vpop.f32.mrb[0].mxu0
      %v329 = vadd.f32 %v241, %v328
      %v330 = vpop.f32.mrb[0].mxu0
      %v331 = vadd.f32 %v241, %v330
      %332 = vdwg.mxu0
      %v333 = vmax.f32 %v315, 0.0
      %v334 = vmax.f32 %v317, 0.0
      %v335 = vmax.f32 %v319, 0.0
      %v336 = vmax.f32 %v321, 0.0
      %v337 = vmax.f32 %v325, 0.0
      %v338 = vmax.f32 %v327, 0.0
      %v339 = vmax.f32 %v329, 0.0
      %v340 = vmax.f32 %v331, 0.0
      %s341 = scalar_lea.vmem %s1, 16
      %v342 = vld [vmem:[%s341] sm:$0xf]
      %v343 = vld [vmem:[%s341 + $0x4] sm:$0xf]
      %v344 = vld [vmem:[%s341 + $0x8] sm:$0xf]
      %v345 = vld [vmem:[%s341 + $0xc] sm:$0xf]
      %v346 = vpack.c.bf16 %v335, %v333
      %v347 = vpack.c.bf16 %v336, %v334
      %v348 = vpack.c.bf16 %v339, %v337
      %v349 = vpack.c.bf16 %v340, %v338
      %s350 = scalar_lea.vmem %s2, 32
      %v351 = vld [vmem:[%s350] sm:$0xff]
      %v352 = vld [vmem:[%s350 + $0x8] sm:$0xff]
      %v353 = vld [vmem:[%s350 + $0x10] sm:$0xff]
      %v354 = vld [vmem:[%s350 + $0x18] sm:$0xff]
      %356 = vset.pattern.permute.xlu0 0
      %357 = vperm.xlu0 %356, %v351
      %v358 = vpop.permute.xlu0 %357
      %361 = vset.pattern.permute.xlu0 0
      %362 = vperm.xlu0 %361, %v352
      %v363 = vpop.permute.xlu0 %362
      %366 = vset.pattern.permute.xlu0 0
      %367 = vperm.xlu0 %366, %v353
      %v368 = vpop.permute.xlu0 %367
      %371 = vset.pattern.permute.xlu0 0
      %372 = vperm.xlu0 %371, %v354
      %v373 = vpop.permute.xlu0 %372
      %v379 = vunpack.c.l.b16 %v342
      %v380 = vunpack.c.l.b16 %v343
      %v381 = vunpack.c.l.b16 %v344
      %v382 = vunpack.c.l.b16 %v345
      %v383 = vpack.c.b16 %v380, %v379
      %v384 = vpack.c.b16 %v382, %v381
      %v386 = vsel %vm273, %v383, 0
      %v389 = vsel %vm273, %v384, 0
      %391 = vmatprep.subr.bf16.mxu0 %v347
      %392 = vmatpush1.bf16.msra.mxu0 %v346
      %393 = vmatprep.subr.bf16.mxu0 %v349
      %394 = vmatpush1.bf16.msra.mxu0 %v348
      %395 = vmatprep.subr.bf16.mxu0 0
      %396 = vmatpush1.bf16.msra.mxu0 0
      %397 = vmatprep.subr.bf16.mxu0 0
      %398 = vmatpush1.bf16.msra.mxu0 0
      %399 = vmatprep.subr.bf16.mxu0 0
      %400 = vmatpush1.bf16.msra.mxu0 0
      %401 = vmatprep.subr.bf16.mxu0 0
      %402 = vmatpush1.bf16.msra.mxu0 0
      %403 = vmatprep.subr.bf16.mxu0 0
      %404 = vmatpush1.bf16.msra.mxu0 0
      %405 = vmatprep.subr.bf16.mxu0 0
      %406 = vmatpush1.bf16.msra.mxu0 0
      %407 = vmatprep.subr.bf16.mxu0 0
      %408 = vmatpush1.bf16.msra.mxu0 0
      %409 = vmatprep.subr.bf16.mxu0 0
      %410 = vmatpush1.bf16.msra.mxu0 0
      %411 = vmatprep.subr.bf16.mxu0 0
      %412 = vmatpush1.bf16.msra.mxu0 0
      %413 = vmatprep.subr.bf16.mxu0 0
      %414 = vmatpush1.bf16.msra.mxu0 0
      %415 = vmatprep.subr.bf16.mxu0 0
      %416 = vmatpush1.bf16.msra.mxu0 0
      %417 = vmatprep.subr.bf16.mxu0 0
      %418 = vmatpush1.bf16.msra.mxu0 0
      %419 = vmatprep.subr.bf16.mxu0 0
      %420 = vmatpush1.bf16.msra.mxu0 0
      %421 = vmatprep.subr.bf16.mxu0 0
      %422 = vmatpush1.bf16.msra.mxu0 0
      %423 = vmatprep.mubr.bf16.mxu0 0
      %424 = vmatmul.mubr.bf16.gmra.mrb[0].mxu0 %v386
      %v425 = vpop.f32.mrb[0].mxu0
      %v426 = vadd.f32 %v358, %v425
      %v427 = vpop.f32.mrb[0].mxu0
      %v428 = vadd.f32 %v358, %v427
      %v429 = vpop.f32.mrb[0].mxu0
      %v430 = vadd.f32 %v363, %v429
      %v431 = vpop.f32.mrb[0].mxu0
      %v432 = vadd.f32 %v363, %v431
      %433 = vmatprep.mubr.bf16.mxu0 0
      %434 = vmatmul.mubr.bf16.gmra.mrb[0].mxu0 %v389
      %v435 = vpop.f32.mrb[0].mxu0
      %v436 = vadd.f32 %v368, %v435
      %v437 = vpop.f32.mrb[0].mxu0
      %v438 = vadd.f32 %v368, %v437
      %v439 = vpop.f32.mrb[0].mxu0
      %v440 = vadd.f32 %v373, %v439
      %v441 = vpop.f32.mrb[0].mxu0
      %v442 = vadd.f32 %v373, %v441
      %443 = vdwg.mxu0
      %v444 = vmax.f32 %v426, 0.0
      %v445 = vmax.f32 %v428, 0.0
      %v446 = vmax.f32 %v430, 0.0
      %v447 = vmax.f32 %v432, 0.0
      %v448 = vmax.f32 %v436, 0.0
      %v449 = vmax.f32 %v438, 0.0
      %v450 = vmax.f32 %v440, 0.0
      %v451 = vmax.f32 %v442, 0.0
      %s452 = scalar_lea.vmem %s1, 32
      %v453 = vld [vmem:[%s452] sm:$0xf]
      %v454 = vld [vmem:[%s452 + $0x4] sm:$0xf]
      %v455 = vld [vmem:[%s452 + $0x8] sm:$0xf]
      %v456 = vld [vmem:[%s452 + $0xc] sm:$0xf]
      %v457 = vpack.c.bf16 %v446, %v444
      %v458 = vpack.c.bf16 %v447, %v445
      %v459 = vpack.c.bf16 %v450, %v448
      %v460 = vpack.c.bf16 %v451, %v449
      %s461 = scalar_lea.vmem %s2, 64
      %v462 = vld [vmem:[%s461] sm:$0xff]
      %v463 = vld [vmem:[%s461 + $0x8] sm:$0xff]
      %v464 = vld [vmem:[%s461 + $0x10] sm:$0xff]
      %v465 = vld [vmem:[%s461 + $0x18] sm:$0xff]
      %467 = vset.pattern.permute.xlu0 0
      %468 = vperm.xlu0 %467, %v462
      %v469 = vpop.permute.xlu0 %468
      %472 = vset.pattern.permute.xlu0 0
      %473 = vperm.xlu0 %472, %v463
      %v474 = vpop.permute.xlu0 %473
      %477 = vset.pattern.permute.xlu0 0
      %478 = vperm.xlu0 %477, %v464
      %v479 = vpop.permute.xlu0 %478
      %482 = vset.pattern.permute.xlu0 0
      %483 = vperm.xlu0 %482, %v465
      %v484 = vpop.permute.xlu0 %483
      %v490 = vunpack.c.l.b16 %v453
      %v491 = vunpack.c.l.b16 %v454
      %v492 = vunpack.c.l.b16 %v455
      %v493 = vunpack.c.l.b16 %v456
      %v494 = vpack.c.b16 %v491, %v490
      %v495 = vpack.c.b16 %v493, %v492
      %v497 = vsel %vm273, %v494, 0
      %v500 = vsel %vm273, %v495, 0
      %502 = vmatprep.subr.bf16.mxu0 %v458
      %503 = vmatpush1.bf16.msra.mxu0 %v457
      %504 = vmatprep.subr.bf16.mxu0 %v460
      %505 = vmatpush1.bf16.msra.mxu0 %v459
      %506 = vmatprep.subr.bf16.mxu0 0
      %507 = vmatpush1.bf16.msra.mxu0 0
      %508 = vmatprep.subr.bf16.mxu0 0
      %509 = vmatpush1.bf16.msra.mxu0 0
      %510 = vmatprep.subr.bf16.mxu0 0
      %511 = vmatpush1.bf16.msra.mxu0 0
      %512 = vmatprep.subr.bf16.mxu0 0
      %513 = vmatpush1.bf16.msra.mxu0 0
      %514 = vmatprep.subr.bf16.mxu0 0
      %515 = vmatpush1.bf16.msra.mxu0 0
      %516 = vmatprep.subr.bf16.mxu0 0
      %517 = vmatpush1.bf16.msra.mxu0 0
      %518 = vmatprep.subr.bf16.mxu0 0
      %519 = vmatpush1.bf16.msra.mxu0 0
      %520 = vmatprep.subr.bf16.mxu0 0
      %521 = vmatpush1.bf16.msra.mxu0 0
      %522 = vmatprep.subr.bf16.mxu0 0
      %523 = vmatpush1.bf16.msra.mxu0 0
      %524 = vmatprep.subr.bf16.mxu0 0
      %525 = vmatpush1.bf16.msra.mxu0 0
      %526 = vmatprep.subr.bf16.mxu0 0
      %527 = vmatpush1.bf16.msra.mxu0 0
      %528 = vmatprep.subr.bf16.mxu0 0
      %529 = vmatpush1.bf16.msra.mxu0 0
      %530 = vmatprep.subr.bf16.mxu0 0
      %531 = vmatpush1.bf16.msra.mxu0 0
      %532 = vmatprep.subr.bf16.mxu0 0
      %533 = vmatpush1.bf16.msra.mxu0 0
      %534 = vmatprep.mubr.bf16.mxu0 0
      %535 = vmatmul.mubr.bf16.gmra.mrb[0].mxu0 %v497
      %v536 = vpop.f32.mrb[0].mxu0
      %v537 = vadd.f32 %v469, %v536
      %v538 = vpop.f32.mrb[0].mxu0
      %v539 = vadd.f32 %v469, %v538
      %v540 = vpop.f32.mrb[0].mxu0
      %v541 = vadd.f32 %v474, %v540
      %v542 = vpop.f32.mrb[0].mxu0
      %v543 = vadd.f32 %v474, %v542
      %544 = vmatprep.mubr.bf16.mxu0 0
      %545 = vmatmul.mubr.bf16.gmra.mrb[0].mxu0 %v500
      %v546 = vpop.f32.mrb[0].mxu0
      %v547 = vadd.f32 %v479, %v546
      %v548 = vpop.f32.mrb[0].mxu0
      %v549 = vadd.f32 %v479, %v548
      %v550 = vpop.f32.mrb[0].mxu0
      %v551 = vadd.f32 %v484, %v550
      %v552 = vpop.f32.mrb[0].mxu0
      %v553 = vadd.f32 %v484, %v552
      %554 = vdwg.mxu0
      %v555 = vunpack.c.l.bf16 %v211
      %v556 = vunpack.c.h.bf16 %v211
      %v557 = vunpack.c.l.bf16 %v212
      %v558 = vunpack.c.h.bf16 %v212
      %v559 = vunpack.c.l.bf16 %v213
      %v560 = vunpack.c.h.bf16 %v213
      %v561 = vunpack.c.l.bf16 %v214
      %v562 = vunpack.c.h.bf16 %v214
      %v563 = vadd.f32 %v537, %v555
      %v564 = vadd.f32 %v539, %v556
      %v565 = vadd.f32 %v541, %v557
      %v566 = vadd.f32 %v543, %v558
      %v567 = vadd.f32 %v547, %v559
      %v568 = vadd.f32 %v549, %v560
      %v569 = vadd.f32 %v551, %v561
      %v570 = vadd.f32 %v553, %v562
      %v571 = vmax.f32 %v563, 0.0
      %v572 = vmax.f32 %v564, 0.0
      %v573 = vmax.f32 %v565, 0.0
      %v574 = vmax.f32 %v566, 0.0
      %v575 = vmax.f32 %v567, 0.0
      %v576 = vmax.f32 %v568, 0.0
      %v577 = vmax.f32 %v569, 0.0
      %v578 = vmax.f32 %v570, 0.0
      %v579 = vpack.c.bf16 %v573, %v571
      %v580 = vpack.c.bf16 %v574, %v572
      %v581 = vpack.c.bf16 %v577, %v575
      %v582 = vpack.c.bf16 %v578, %v576
      %v587 = vunpack.c.l.b16 %v579
      %v588 = vunpack.c.l.b16 %v580
      %v589 = vunpack.c.h.b16 %v579
      %v590 = vunpack.c.h.b16 %v580
      %v591 = vunpack.c.l.b16 %v581
      %v592 = vunpack.c.l.b16 %v582
      %v593 = vunpack.c.h.b16 %v581
      %v594 = vunpack.c.h.b16 %v582
      %v595 = vpack.c.b16 %v588, %v587
      %v596 = vpack.c.b16 %v590, %v589
      %v597 = vpack.c.b16 %v592, %v591
      %v598 = vpack.c.b16 %v594, %v593
      %603 = vst [vmem:[%s208] sm:$0xff] %v595
      %604 = vst [vmem:[%s208 + $0x8] sm:$0xff] %v596
      %605 = vst [vmem:[%s208 + $0x10] sm:$0xff] %v597
      %606 = vst [vmem:[%s208 + $0x18] sm:$0xff] %v598
      %s607 = smul.u32 2, %s19
      %p608 = scmp.lt.s32.totalorder %s18, 1
      %s609 = scalar_select %p608, %s18, 1
      %p610 = scmp.lt.s32.totalorder %s607, 1
      %s611 = scalar_select %p610, %s607, 1
      %s612 = smul.addr %s609, 8
      %s613 = sadd.s32 %s611, %s612
      %s614 = smul.addr %s613, 4
      %s615 = scalar_lea.vmem %s3, %s614
      // Predicated region
      $region33: #{residual_block_pallas.1} parent=31 // pred_check
        %p616 = pneg %p116
      $region34: #{residual_block_pallas.1} parent=31 // pred_check_branch
        %618 = sbr.rel (%p616) target = $region36
      $region35: #{residual_block_pallas.1} parent=31 // pred_region
        %s619 = smul.u32 2, %s19
      $region36: #{residual_block_pallas.1} parent=31 // pred_fallthru
        _
    $region32: #{residual_block_pallas.1} parent=5 // pred_fallthru
      _
    %p620 = scmp.le.s32.totalorder 2, %s9
    // Predicated region
    $region37: #{residual_block_pallas.1} parent=5 // pred_check
      %p621 = pneg %p620
    $region38: #{residual_block_pallas.1} parent=5 // pred_check_branch
      %623 = sbr.rel (%p621) target = $region40
    $region39: #{residual_block_pallas.1} parent=5 // pred_region
      %s624 = ssub.s32 %s9, 2
      // Predicated region
      $region41: #{residual_block_pallas.1} parent=39 // pred_check
        %p625 = pneg %p122
      $region42: #{residual_block_pallas.1} parent=39 // pred_check_branch
        %627 = sbr.rel (%p625) target = $region44
      $region43: #{residual_block_pallas.1} parent=39 // pred_region
        %s628 = smul.u32 2, %s21
        %p629 = scmp.lt.s32.totalorder %s20, 1
        %s630 = scalar_select %p629, %s20, 1
        %p631 = scmp.lt.s32.totalorder %s628, 1
        %s632 = scalar_select %p631, %s628, 1
        %s633 = smul.addr %s630, 8
        %s634 = sadd.s32 %s632, %s633
        %s635 = smul.addr %s634, 4
        %s636 = scalar_lea.vmem %s3, %s635
      $region44: #{residual_block_pallas.1} parent=39 // pred_fallthru
        _
    $region40: #{residual_block_pallas.1} parent=5 // pred_fallthru
      _
  $region6: #{residual_block_pallas.1} parent=0 // loop_footer
    %s13 = sadd.s32 1, %s9
  $region7: #{residual_block_pallas.1} parent=0 // loop_footer_branch
    %8 = sbr.rel target = $region3
  $region8: #{residual_block_pallas.1} parent=0 // loop_exit
    _

</llo_original>
